<compile_context>
chip_gen: v5e
topology: v5e:2x2
jax: 0.10.0
libtpu: 0.0.40
codegen_flags: <defaults>
</compile_context>

<pallas_src>
import math

import jax
import jax.numpy as jnp
from jax.experimental import pallas as pl
from jax.experimental.pallas import tpu as pltpu


def _relaxed_exp_kernel(head_ref, lb_ref, ub_ref, err_ref, adv_ref,
                        new_head_ref, new_err_ref):
    f32 = jnp.float32
    head = head_ref[...].astype(f32)     # (1, TR, 128)
    lb = lb_ref[...].astype(f32)         # (1, TR, 128)
    ub = ub_ref[...].astype(f32)         # (1, TR, 128)

    D = 1e-6
    is_tight = ub == lb
    exp_lb = jnp.exp(lb)
    exp_ub = jnp.exp(ub)

    # chord slope and its cap; exp(lb + 1 - 0.1) == exp(lb) * e^0.9 (reuses exp_lb,
    # saves one EUP transcendental per element).
    exp_lambda_s = (exp_ub - exp_lb) / (ub - lb + D)
    exp_lambda = jnp.minimum(exp_lambda_s, exp_lb * math.exp(0.9))
    exp_ub_0 = jnp.where(exp_lambda > exp_lambda_s,
                         exp_lb - exp_lambda * lb,
                         exp_ub - exp_lambda * ub)
    lam_term = exp_lambda * (1.0 - jnp.log(exp_lambda))
    exp_mu = 0.5 * (lam_term + exp_ub_0)
    exp_delta = 0.5 * (exp_ub_0 - lam_term)

    exp_lambda = jnp.where(is_tight, jnp.zeros_like(exp_lambda), exp_lambda)
    exp_mu = jnp.where(is_tight, exp_ub, exp_mu)
    exp_delta = jnp.where(is_tight, jnp.zeros_like(exp_delta), exp_delta)
    # TODO(synk): torch NaN assert on exp_mu/exp_lambda has no clean in-kernel
    # equivalent (could use pl.debug_check under pl.enable_debug_checks()).

    out_dtype = new_head_ref.dtype
    new_head_ref[...] = (head * exp_lambda + exp_mu).astype(out_dtype)

    E = err_ref.shape[1]
    lam_b = exp_lambda[:, None]          # (1, 1, TR, 128) broadcast over error dim
    del_b = exp_delta[:, None]
    # scaled existing error terms, then appended adversarial error terms.
    new_err_ref[:, :E] = (err_ref[...].astype(f32) * lam_b).astype(out_dtype)
    new_err_ref[:, E:] = (adv_ref[...].astype(f32) * del_b).astype(out_dtype)


def _pick_row_tile(n_rows, n_err_terms):
    """Choose a sublane-row tile (multiple of 8) so the double-buffered
    per-step working set stays under ~8 MiB regardless of N and E+A."""
    # per 128-lane row: head + lb + ub + head_out = 4 arrays, err/adv in + err out = 2*(E+A)
    bytes_per_row = (4 + 2 * n_err_terms) * 128 * 4
    budget = 8 * 1024 * 1024
    tr = budget // (2 * bytes_per_row)
    tr = max(8, min(512, (tr // 8) * 8))
    rows_ceil8 = ((n_rows + 7) // 8) * 8
    return min(tr, rows_ceil8)


def relaxed_exp(curr_head, curr_errors, lb, ub, adv_errors):
    """Forward of RelaxedExp (adv_errors path, k=None).

    curr_head  : (B, C, H, W)
    curr_errors: (B*E, C, H, W)
    lb, ub     : (B, C, H, W)        -- self.layer.bounds
    adv_errors : (B, A, C, H, W)
    returns (new_head (B,C,H,W), new_errors (B*(E+A), C, H, W))
    """
    # TODO(synk): k-is-not-None path (my_cauchy random error terms) not implemented;
    # only the adv_errors (k=None) path is covered.
    B = curr_head.shape[0]
    feat = curr_head.shape[1:]
    N = math.prod(feat)
    E = curr_errors.shape[0] // B
    A = adv_errors.shape[1]
    dtype = curr_head.dtype

    # Lane-pad N to a multiple of 128 and reshape the feature dim to (rows, 128)
    # so all vregs are full [8,128] tiles.
    rows = (N + 127) // 128
    TR = _pick_row_tile(rows, E + A)
    rows_pad = ((rows + TR - 1) // TR) * TR
    n_pad = rows_pad * 128
    pad = n_pad - N

    def pad_last(x):
        return jnp.pad(x, [(0, 0)] * (x.ndim - 1) + [(0, pad)]) if pad else x

    head_p = pad_last(curr_head.reshape(B, N)).reshape(B, rows_pad, 128)
    lb_p = pad_last(lb.reshape(B, N)).reshape(B, rows_pad, 128)
    ub_p = pad_last(ub.reshape(B, N)).reshape(B, rows_pad, 128)
    err_p = pad_last(curr_errors.reshape(B, E, N)).reshape(B, E, rows_pad, 128)
    adv_p = pad_last(adv_errors.reshape(B, A, N)).reshape(B, A, rows_pad, 128)

    grid = (B, rows_pad // TR)

    vec_spec = pl.BlockSpec((1, TR, 128), lambda b, r: (b, r, 0))
    err_spec = pl.BlockSpec((1, E, TR, 128), lambda b, r: (b, 0, r, 0))
    adv_spec = pl.BlockSpec((1, A, TR, 128), lambda b, r: (b, 0, r, 0))
    out_err_spec = pl.BlockSpec((1, E + A, TR, 128), lambda b, r: (b, 0, r, 0))

    out_head, out_err = pl.pallas_call(
        _relaxed_exp_kernel,
        out_shape=(
            jax.ShapeDtypeStruct((B, rows_pad, 128), dtype),
            jax.ShapeDtypeStruct((B, E + A, rows_pad, 128), dtype),
        ),
        grid_spec=pltpu.PrefetchScalarGridSpec(
            num_scalar_prefetch=0,
            grid=grid,
            in_specs=[
                vec_spec,   # curr_head
                vec_spec,   # lb
                vec_spec,   # ub
                err_spec,   # curr_errors
                adv_spec,   # adv_errors
            ],
            out_specs=[
                vec_spec,
                out_err_spec,
            ],
        ),
        compiler_params=pltpu.CompilerParams(
            dimension_semantics=("parallel", "parallel")),
    )(head_p, lb_p, ub_p, err_p, adv_p)

    new_head = out_head.reshape(B, n_pad)[:, :N].reshape(B, *feat)
    new_errors = out_err.reshape(B, E + A, n_pad)[:, :, :N].reshape(B * (E + A), *feat)
    return new_head, new_errors


def relaxed_exp_ref(curr_head, curr_errors, lb, ub, adv_errors):
    """Pure-JAX reference mirroring the PyTorch forward."""
    B = curr_head.shape[0]
    feat = curr_head.shape[1:]
    E = curr_errors.shape[0] // B
    errs = curr_errors.reshape(B, E, *feat)

    D = 1e-6
    is_tight = ub == lb
    lam_s = (jnp.exp(ub) - jnp.exp(lb)) / (ub - lb + D)
    lam = jnp.minimum(lam_s, jnp.exp(lb + 1 - 0.1))
    ub0 = jnp.where(lam > lam_s, jnp.exp(lb) - lam * lb, jnp.exp(ub) - lam * ub)
    mu = 0.5 * (lam * (1 - jnp.log(lam)) + ub0)
    delta = 0.5 * (ub0 - lam * (1 - jnp.log(lam)))
    lam = jnp.where(is_tight, jnp.zeros_like(lam), lam)
    mu = jnp.where(is_tight, jnp.exp(ub), mu)
    delta = jnp.where(is_tight, jnp.zeros_like(delta), delta)

    new_head = curr_head * lam + mu
    errors = errs * lam[:, None]
    new_errors = jnp.concatenate([errors, delta[:, None] * adv_errors], axis=1)
    return new_head, new_errors.reshape(-1, *feat)


if __name__ == "__main__":
    def run_case(key, B, C, H, W, E, A):
        k1, k2, k3, k4, k5 = jax.random.split(key, 5)
        curr_head = jax.random.normal(k1, (B, C, H, W), dtype=jnp.float32)
        curr_errors = 0.1 * jax.random.normal(k2, (B * E, C, H, W), dtype=jnp.float32)
        adv_errors = 0.1 * jax.random.normal(k3, (B, A, C, H, W), dtype=jnp.float32)

        # Deterministic pre-activation bounds (self.layer.bounds): lb <= ub,
        # with some exactly-tight entries to exercise the is_tight branch.
        center = jax.random.normal(k4, (B, C, H, W), dtype=jnp.float32)
        radius = 0.5 * jnp.abs(jax.random.normal(k5, (B, C, H, W), dtype=jnp.float32))
        tight_mask = (jnp.arange(C * H * W).reshape(1, C, H, W) % 7) == 0
        radius = jnp.where(tight_mask, 0.0, radius)
        lb = center - radius
        ub = center + radius

        new_head, new_errors = relaxed_exp(curr_head, curr_errors, lb, ub, adv_errors)
        jax.block_until_ready((new_head, new_errors))

        ref_head, ref_errors = relaxed_exp_ref(curr_head, curr_errors, lb, ub, adv_errors)
        assert new_head.shape == (B, C, H, W)
        assert new_errors.shape == (B * (E + A), C, H, W)
        assert jnp.allclose(new_head, ref_head, atol=1e-5, rtol=1e-5)
        assert jnp.allclose(new_errors, ref_errors, atol=1e-5, rtol=1e-5)

    key = jax.random.PRNGKey(0)
    k_a, k_b = jax.random.split(key)
    # lane-aligned feature size (C*H*W = 1024)
    run_case(k_a, B=2, C=4, H=16, W=16, E=3, A=2)
    # non-lane-aligned feature size (C*H*W = 189) exercises the padding path
    run_case(k_b, B=2, C=3, H=7, W=9, E=3, A=2)

    print("KERNEL_OK")
</pallas_src>

<mosaic_0001>
module attributes {stable_mosaic.version = 11 : i64} {
  func.func @_relaxed_exp_kernel(%arg0: i32, %arg1: i32, %arg2: memref<1x8x128xf32, #tpu.memory_space<vmem>>, %arg3: memref<1x8x128xf32, #tpu.memory_space<vmem>>, %arg4: memref<1x8x128xf32, #tpu.memory_space<vmem>>, %arg5: memref<1x3x8x128xf32, #tpu.memory_space<vmem>>, %arg6: memref<1x2x8x128xf32, #tpu.memory_space<vmem>>, %arg7: memref<1x8x128xf32, #tpu.memory_space<vmem>>, %arg8: memref<1x5x8x128xf32, #tpu.memory_space<vmem>>) attributes {dimension_semantics = [#tpu.dimension_semantics<parallel>, #tpu.dimension_semantics<parallel>], iteration_bounds = array<i64: 2, 1>, scalar_prefetch = 0 : i64, scratch_operands = 0 : i64, tpu.core_type = #tpu.core_type<tc>, window_params = [{transform_indices = @transform_0, window_bounds = array<i64: 1, 8, 128>}, {transform_indices = @transform_1, window_bounds = array<i64: 1, 8, 128>}, {transform_indices = @transform_2, window_bounds = array<i64: 1, 8, 128>}, {transform_indices = @transform_3, window_bounds = array<i64: 1, 3, 8, 128>}, {transform_indices = @transform_4, window_bounds = array<i64: 1, 2, 8, 128>}, {transform_indices = @transform_5, window_bounds = array<i64: 1, 8, 128>}, {transform_indices = @transform_6, window_bounds = array<i64: 1, 5, 8, 128>}]} {
    %c0 = arith.constant 0 : index
    %c0_0 = arith.constant 0 : index
    %c0_1 = arith.constant 0 : index
    %0 = vector.load %arg2[%c0, %c0_0, %c0_1] : memref<1x8x128xf32, #tpu.memory_space<vmem>>, vector<1x8x128xf32>
    %c0_2 = arith.constant 0 : index
    %c0_3 = arith.constant 0 : index
    %c0_4 = arith.constant 0 : index
    %1 = vector.load %arg3[%c0_2, %c0_3, %c0_4] : memref<1x8x128xf32, #tpu.memory_space<vmem>>, vector<1x8x128xf32>
    %c0_5 = arith.constant 0 : index
    %c0_6 = arith.constant 0 : index
    %c0_7 = arith.constant 0 : index
    %2 = vector.load %arg4[%c0_5, %c0_6, %c0_7] : memref<1x8x128xf32, #tpu.memory_space<vmem>>, vector<1x8x128xf32>
    %3 = arith.cmpf oeq, %2, %1 : vector<1x8x128xf32>
    %4 = math.exp %1 : vector<1x8x128xf32>
    %5 = math.exp %2 : vector<1x8x128xf32>
    %6 = arith.subf %5, %4 : vector<1x8x128xf32>
    %7 = arith.subf %2, %1 : vector<1x8x128xf32>
    %cst = arith.constant 9.99999997E-7 : f32
    %8 = vector.broadcast %cst : f32 to vector<1x8x128xf32>
    %9 = arith.addf %7, %8 : vector<1x8x128xf32>
    %10 = arith.divf %6, %9 : vector<1x8x128xf32>
    %cst_8 = arith.constant 2.45960307 : f32
    %11 = vector.broadcast %cst_8 : f32 to vector<1x8x128xf32>
    %12 = arith.mulf %4, %11 : vector<1x8x128xf32>
    %13 = arith.minimumf %10, %12 : vector<1x8x128xf32>
    %14 = arith.cmpf ogt, %13, %10 : vector<1x8x128xf32>
    %15 = arith.mulf %13, %1 : vector<1x8x128xf32>
    %16 = arith.subf %4, %15 : vector<1x8x128xf32>
    %17 = arith.mulf %13, %2 : vector<1x8x128xf32>
    %18 = arith.subf %5, %17 : vector<1x8x128xf32>
    %19 = arith.select %14, %16, %18 : vector<1x8x128xi1>, vector<1x8x128xf32>
    %20 = math.log %13 : vector<1x8x128xf32>
    %cst_9 = arith.constant 1.000000e+00 : f32
    %21 = vector.broadcast %cst_9 : f32 to vector<1x8x128xf32>
    %22 = arith.subf %21, %20 : vector<1x8x128xf32>
    %23 = arith.mulf %13, %22 : vector<1x8x128xf32>
    %24 = arith.addf %23, %19 : vector<1x8x128xf32>
    %cst_10 = arith.constant 5.000000e-01 : f32
    %25 = vector.broadcast %cst_10 : f32 to vector<1x8x128xf32>
    %26 = arith.mulf %25, %24 : vector<1x8x128xf32>
    %27 = arith.subf %19, %23 : vector<1x8x128xf32>
    %cst_11 = arith.constant 5.000000e-01 : f32
    %28 = vector.broadcast %cst_11 : f32 to vector<1x8x128xf32>
    %29 = arith.mulf %28, %27 : vector<1x8x128xf32>
    %cst_12 = arith.constant 0.000000e+00 : f32
    %30 = vector.broadcast %cst_12 : f32 to vector<1x8x128xf32>
    %31 = arith.select %3, %30, %13 : vector<1x8x128xi1>, vector<1x8x128xf32>
    %32 = arith.select %3, %5, %26 : vector<1x8x128xi1>, vector<1x8x128xf32>
    %cst_13 = arith.constant 0.000000e+00 : f32
    %33 = vector.broadcast %cst_13 : f32 to vector<1x8x128xf32>
    %34 = arith.select %3, %33, %29 : vector<1x8x128xi1>, vector<1x8x128xf32>
    %35 = arith.mulf %0, %31 : vector<1x8x128xf32>
    %36 = arith.addf %35, %32 : vector<1x8x128xf32>
    %c0_14 = arith.constant 0 : index
    %c0_15 = arith.constant 0 : index
    %c0_16 = arith.constant 0 : index
    %37 = vector.load %arg7[%c0_14, %c0_15, %c0_16] : memref<1x8x128xf32, #tpu.memory_space<vmem>>, vector<1x8x128xf32>
    tpu.vector_store %arg7[%c0_14, %c0_15, %c0_16], %36 {strides = array<i32>} : memref<1x8x128xf32, #tpu.memory_space<vmem>>, vector<1x8x128xf32>,
    %38 = vector.shape_cast %31 : vector<1x8x128xf32> to vector<1x1x8x128xf32>
    %39 = vector.shape_cast %34 : vector<1x8x128xf32> to vector<1x1x8x128xf32>
    %c0_17 = arith.constant 0 : index
    %c0_18 = arith.constant 0 : index
    %c0_19 = arith.constant 0 : index
    %c0_20 = arith.constant 0 : index
    %40 = vector.load %arg5[%c0_17, %c0_18, %c0_19, %c0_20] : memref<1x3x8x128xf32, #tpu.memory_space<vmem>>, vector<1x3x8x128xf32>
    %41 = vector.broadcast %38 : vector<1x1x8x128xf32> to vector<1x3x8x128xf32>
    %42 = arith.mulf %40, %41 : vector<1x3x8x128xf32>
    %c0_21 = arith.constant 0 : index
    %c0_22 = arith.constant 0 : index
    %c0_23 = arith.constant 0 : index
    %c0_24 = arith.constant 0 : index
    %43 = vector.load %arg8[%c0_21, %c0_22, %c0_23, %c0_24] : memref<1x5x8x128xf32, #tpu.memory_space<vmem>>, vector<1x3x8x128xf32>
    tpu.vector_store %arg8[%c0_21, %c0_22, %c0_23, %c0_24], %42 {strides = array<i32>} : memref<1x5x8x128xf32, #tpu.memory_space<vmem>>, vector<1x3x8x128xf32>,
    %c0_25 = arith.constant 0 : index
    %c0_26 = arith.constant 0 : index
    %c0_27 = arith.constant 0 : index
    %c0_28 = arith.constant 0 : index
    %44 = vector.load %arg6[%c0_25, %c0_26, %c0_27, %c0_28] : memref<1x2x8x128xf32, #tpu.memory_space<vmem>>, vector<1x2x8x128xf32>
    %45 = vector.broadcast %39 : vector<1x1x8x128xf32> to vector<1x2x8x128xf32>
    %46 = arith.mulf %44, %45 : vector<1x2x8x128xf32>
    %c0_29 = arith.constant 0 : index
    %c3 = arith.constant 3 : index
    %c0_30 = arith.constant 0 : index
    %c0_31 = arith.constant 0 : index
    %47 = vector.load %arg8[%c0_29, %c3, %c0_30, %c0_31] : memref<1x5x8x128xf32, #tpu.memory_space<vmem>>, vector<1x2x8x128xf32>
    tpu.vector_store %arg8[%c0_29, %c3, %c0_30, %c0_31], %46 {strides = array<i32>} : memref<1x5x8x128xf32, #tpu.memory_space<vmem>>, vector<1x2x8x128xf32>,
    return
  }
  func.func @transform_0(%arg0: i32, %arg1: i32) -> (i32, i32, i32) {
    %c0_i32 = arith.constant 0 : i32
    %c0_i32_0 = arith.constant 0 : i32
    return %arg0, %arg1, %c0_i32 : i32, i32, i32
  }
  func.func @transform_1(%arg0: i32, %arg1: i32) -> (i32, i32, i32) {
    %c0_i32 = arith.constant 0 : i32
    %c0_i32_0 = arith.constant 0 : i32
    return %arg0, %arg1, %c0_i32 : i32, i32, i32
  }
  func.func @transform_2(%arg0: i32, %arg1: i32) -> (i32, i32, i32) {
    %c0_i32 = arith.constant 0 : i32
    %c0_i32_0 = arith.constant 0 : i32
    return %arg0, %arg1, %c0_i32 : i32, i32, i32
  }
  func.func @transform_3(%arg0: i32, %arg1: i32) -> (i32, i32, i32, i32) {
    %c0_i32 = arith.constant 0 : i32
    %c0_i32_0 = arith.constant 0 : i32
    %c0_i32_1 = arith.constant 0 : i32
    return %arg0, %c0_i32, %arg1, %c0_i32_0 : i32, i32, i32, i32
  }
  func.func @transform_4(%arg0: i32, %arg1: i32) -> (i32, i32, i32, i32) {
    %c0_i32 = arith.constant 0 : i32
    %c0_i32_0 = arith.constant 0 : i32
    %c0_i32_1 = arith.constant 0 : i32
    return %arg0, %c0_i32, %arg1, %c0_i32_0 : i32, i32, i32, i32
  }
  func.func @transform_5(%arg0: i32, %arg1: i32) -> (i32, i32, i32) {
    %c0_i32 = arith.constant 0 : i32
    %c0_i32_0 = arith.constant 0 : i32
    return %arg0, %arg1, %c0_i32 : i32, i32, i32
  }
  func.func @transform_6(%arg0: i32, %arg1: i32) -> (i32, i32, i32, i32) {
    %c0_i32 = arith.constant 0 : i32
    %c0_i32_0 = arith.constant 0 : i32
    %c0_i32_1 = arith.constant 0 : i32
    return %arg0, %c0_i32, %arg1, %c0_i32_0 : i32, i32, i32, i32
  }
}

</mosaic_0001>

<llo_original>
// kernel: tpu_custom_call.1
$region0: #{tpu_custom_call.1}
  #allocation0 [shape = 'u32[]', space=smem, size = 0x4, offset = 0x4, fixed_abs, tag = 'smem constant byte address 0x4 - core index']
  #allocation1 [shape = 'u32[72,128]{1,0:T(1,128)}', space=vmem, size = 0x9000, scoped, tag = 'internal scratch']
  %s0 = inlined_call_operand.hbm [shape: f32[2,8,128], index: 0, kind: input, shape index: {}]
  %s1 = inlined_call_operand.hbm [shape: f32[2,8,128], index: 1, kind: input, shape index: {}]
  %s2 = inlined_call_operand.hbm [shape: f32[2,8,128], index: 2, kind: input, shape index: {}]
  %s3 = inlined_call_operand.hbm [shape: f32[2,3,8,128], index: 3, kind: input, shape index: {}]
  %s4 = inlined_call_operand.hbm [shape: f32[2,2,8,128], index: 4, kind: input, shape index: {}]
  %s5 = inlined_call_operand.hbm [shape: f32[2,8,128], index: 5, kind: output, shape index: {0}]
  %s6 = inlined_call_operand.hbm [shape: f32[2,5,8,128], index: 6, kind: output, shape index: {1}]
  %7 = xla_tuple %s5, %s6
  %s8 = sld [smem:[#allocation0]]
  $region81: #{tpu_custom_call.1} parent=0
    _
  %s10 = ssub.s32 1, %s8
  %s11 = scalar_select 0, %s10, %s8
  $region1: #{tpu_custom_call.1} parent=0
    #allocation2 [shape = 'u8[8192]{0}', space=vmem, size = 0x2000, scoped, tag = 'input window, operand 0']
    #allocation3 [shape = 's32[2]{0}', space=sflag, size = 0x8, scoped, tag = 'scoped memory for tpu_custom_call.1']
    #allocation4 [shape = 's32[2]{0}', space=sflag, size = 0x8, scoped, tag = 'scoped memory for tpu_custom_call.1']
    #allocation5 [shape = 'u8[8192]{0}', space=vmem, size = 0x2000, scoped, tag = 'input window, operand 1']
    #allocation6 [shape = 's32[2]{0}', space=sflag, size = 0x8, scoped, tag = 'scoped memory for tpu_custom_call.1']
    #allocation7 [shape = 'u8[8192]{0}', space=vmem, size = 0x2000, scoped, tag = 'input window, operand 2']
    #allocation8 [shape = 'u8[24576]{0}', space=vmem, size = 0x6000, scoped, tag = 'input window, operand 3']
    #allocation9 [shape = 's32[2]{0}', space=sflag, size = 0x8, scoped, tag = 'scoped memory for tpu_custom_call.1']
    #allocation10 [shape = 'u8[16384]{0}', space=vmem, size = 0x4000, scoped, tag = 'input window, operand 4']
    #allocation11 [shape = 'u8[8192]{0}', space=vmem, size = 0x2000, scoped, tag = 'output window, operand 0']
    #allocation12 [shape = 'u8[40960]{0}', space=vmem, size = 0xa000, scoped, tag = 'output window, operand 1']
    #allocation13 [shape = 's32[2]{0}', space=sflag, size = 0x8, scoped, tag = 'scoped memory for tpu_custom_call.1']
    %12 = vsyncpa [#allocation3], 0
    %s13 = scalar_lea.sflag [#allocation3], 1
    %14 = vsyncpa %s13, 0
    %15 = vsyncpa [#allocation6], 0
    %s16 = scalar_lea.sflag [#allocation6], 1
    %17 = vsyncpa %s16, 0
    %18 = vsyncpa [#allocation9], 0
    %s19 = scalar_lea.sflag [#allocation9], 1
    %20 = vsyncpa %s19, 0
    %21 = vsyncpa [#allocation4], 0
    %s22 = scalar_lea.sflag [#allocation4], 1
    %23 = vsyncpa %s22, 0
    %24 = vsyncpa [#allocation13], 0
    %s25 = scalar_lea.sflag [#allocation13], 1
    %26 = vsyncpa %s25, 0
    loop: start=0, step=1, limit=4
    $region2: #{tpu_custom_call.1} parent=1 // loop_pre_header
      _
    $region3: #{tpu_custom_call.1} parent=1 // loop_header
      %s28 = sphi 0, %s32
      %p29 = scmp.ge.s32.totalorder %s28, 4
      %s35 = sphi 0, %s47
      %s36 = sphi 0, %s43
      %s37 = sphi 0, %s35
      %s38 = sphi 0, %s36
      %s39 = sphi 0, %s37
      %s40 = sphi 0, %s38
      %s52 = sphi 0, %s54
      %s55 = sphi 0, %s52
      %s56 = sphi 0, %s55
      %s72 = sphi 0, %s56
      %s80 = sphi 0, %s82
      %s83 = sphi 0, %s80
      %s84 = sphi 0, %s83
      %s100 = sphi 0, %s84
      %s108 = sphi 0, %s110
      %s111 = sphi 0, %s108
      %s112 = sphi 0, %s111
      %s128 = sphi 0, %s112
      %s136 = sphi 0, %s138
      %s139 = sphi 0, %s136
      %s140 = sphi 0, %s139
      %s156 = sphi 0, %s140
      %s164 = sphi 0, %s166
      %s167 = sphi 0, %s164
      %s168 = sphi 0, %s167
      %s184 = sphi 0, %s168
      %s192 = sphi 0, %s194
      %s195 = sphi 0, %s192
      %s196 = sphi 0, %s195
      %s212 = sphi 0, %s196
      %s220 = sphi 0, %s222
      %s223 = sphi 0, %s220
      %s224 = sphi 0, %s223
      %s240 = sphi 0, %s224
    $region4: #{tpu_custom_call.1} parent=1 // loop_header_branch
      %31 = sbr.rel (%p29) target = $region8
    $region5: #{tpu_custom_call.1} parent=1 // loop_body
      %s33 = ssub.s32 %s28, 1
      %s34 = ssub.s32 %s28, 2
      %s41 = sadd.s32 1, %s36
      %p42 = scmp.ge.s32.totalorder %s41, 1
      %s43 = scalar_select %p42, 0, %s41
      %s44 = sadd.s32 1, %s35
      %s45 = scalar_select %p42, %s44, %s35
      %p46 = scmp.ge.s32.totalorder %s45, 2
      %s47 = scalar_select %p46, 0, %s45
      %s48 = ssub.s32 %s35, %s47
      %s49 = ssub.s32 %s36, %s43
      %s50 = sor.u32 %s48, %s49
      %p51 = scmp.eq.s32.totalorder %s50, 0
      %s53 = sadd.s32 %s52, 1
      %s54 = scalar_select %p51, %s52, %s53
      %p57 = pneg %p51
      %p58 = scmp.eq.s32.totalorder %s28, 1
      %p59 = por %p57, %p58
      %p60 = scmp.ne.s32.totalorder %s52, %s55
      %p61 = scmp.eq.s32.totalorder %s28, 0
      %p62 = por %p60, %p61
      %p63 = scmp.ne.s32.totalorder %s52, %s55
      %p64 = scmp.eq.s32.totalorder %s33, 1
      %p65 = por %p63, %p64
      %p66 = scmp.ne.s32.totalorder %s55, %s56
      %p67 = scmp.eq.s32.totalorder %s33, 0
      %p68 = por %p66, %p67
      %p69 = scmp.ne.s32.totalorder %s55, %s56
      %p70 = scmp.eq.s32.totalorder %s34, 1
      %p71 = por %p69, %p70
      %p73 = scmp.ne.s32.totalorder %s56, %s72
      %p74 = scmp.eq.s32.totalorder %s34, 0
      %p75 = por %p73, %p74
      %s76 = ssub.s32 %s35, %s47
      %s77 = ssub.s32 %s36, %s43
      %s78 = sor.u32 %s76, %s77
      %p79 = scmp.eq.s32.totalorder %s78, 0
      %s81 = sadd.s32 %s80, 1
      %s82 = scalar_select %p79, %s80, %s81
      %p85 = pneg %p79
      %p86 = scmp.eq.s32.totalorder %s28, 1
      %p87 = por %p85, %p86
      %p88 = scmp.ne.s32.totalorder %s80, %s83
      %p89 = scmp.eq.s32.totalorder %s28, 0
      %p90 = por %p88, %p89
      %p91 = scmp.ne.s32.totalorder %s80, %s83
      %p92 = scmp.eq.s32.totalorder %s33, 1
      %p93 = por %p91, %p92
      %p94 = scmp.ne.s32.totalorder %s83, %s84
      %p95 = scmp.eq.s32.totalorder %s33, 0
      %p96 = por %p94, %p95
      %p97 = scmp.ne.s32.totalorder %s83, %s84
      %p98 = scmp.eq.s32.totalorder %s34, 1
      %p99 = por %p97, %p98
      %p101 = scmp.ne.s32.totalorder %s84, %s100
      %p102 = scmp.eq.s32.totalorder %s34, 0
      %p103 = por %p101, %p102
      %s104 = ssub.s32 %s35, %s47
      %s105 = ssub.s32 %s36, %s43
      %s106 = sor.u32 %s104, %s105
      %p107 = scmp.eq.s32.totalorder %s106, 0
      %s109 = sadd.s32 %s108, 1
      %s110 = scalar_select %p107, %s108, %s109
      %p113 = pneg %p107
      %p114 = scmp.eq.s32.totalorder %s28, 1
      %p115 = por %p113, %p114
      %p116 = scmp.ne.s32.totalorder %s108, %s111
      %p117 = scmp.eq.s32.totalorder %s28, 0
      %p118 = por %p116, %p117
      %p119 = scmp.ne.s32.totalorder %s108, %s111
      %p120 = scmp.eq.s32.totalorder %s33, 1
      %p121 = por %p119, %p120
      %p122 = scmp.ne.s32.totalorder %s111, %s112
      %p123 = scmp.eq.s32.totalorder %s33, 0
      %p124 = por %p122, %p123
      %p125 = scmp.ne.s32.totalorder %s111, %s112
      %p126 = scmp.eq.s32.totalorder %s34, 1
      %p127 = por %p125, %p126
      %p129 = scmp.ne.s32.totalorder %s112, %s128
      %p130 = scmp.eq.s32.totalorder %s34, 0
      %p131 = por %p129, %p130
      %s132 = ssub.s32 %s35, %s47
      %s133 = ssub.s32 %s36, %s43
      %s134 = sor.u32 %s132, %s133
      %p135 = scmp.eq.s32.totalorder %s134, 0
      %s137 = sadd.s32 %s136, 1
      %s138 = scalar_select %p135, %s136, %s137
      %p141 = pneg %p135
      %p142 = scmp.eq.s32.totalorder %s28, 1
      %p143 = por %p141, %p142
      %p144 = scmp.ne.s32.totalorder %s136, %s139
      %p145 = scmp.eq.s32.totalorder %s28, 0
      %p146 = por %p144, %p145
      %p147 = scmp.ne.s32.totalorder %s136, %s139
      %p148 = scmp.eq.s32.totalorder %s33, 1
      %p149 = por %p147, %p148
      %p150 = scmp.ne.s32.totalorder %s139, %s140
      %p151 = scmp.eq.s32.totalorder %s33, 0
      %p152 = por %p150, %p151
      %p153 = scmp.ne.s32.totalorder %s139, %s140
      %p154 = scmp.eq.s32.totalorder %s34, 1
      %p155 = por %p153, %p154
      %p157 = scmp.ne.s32.totalorder %s140, %s156
      %p158 = scmp.eq.s32.totalorder %s34, 0
      %p159 = por %p157, %p158
      %s160 = ssub.s32 %s35, %s47
      %s161 = ssub.s32 %s36, %s43
      %s162 = sor.u32 %s160, %s161
      %p163 = scmp.eq.s32.totalorder %s162, 0
      %s165 = sadd.s32 %s164, 1
      %s166 = scalar_select %p163, %s164, %s165
      %p169 = pneg %p163
      %p170 = scmp.eq.s32.totalorder %s28, 1
      %p171 = por %p169, %p170
      %p172 = scmp.ne.s32.totalorder %s164, %s167
      %p173 = scmp.eq.s32.totalorder %s28, 0
      %p174 = por %p172, %p173
      %p175 = scmp.ne.s32.totalorder %s164, %s167
      %p176 = scmp.eq.s32.totalorder %s33, 1
      %p177 = por %p175, %p176
      %p178 = scmp.ne.s32.totalorder %s167, %s168
      %p179 = scmp.eq.s32.totalorder %s33, 0
      %p180 = por %p178, %p179
      %p181 = scmp.ne.s32.totalorder %s167, %s168
      %p182 = scmp.eq.s32.totalorder %s34, 1
      %p183 = por %p181, %p182
      %p185 = scmp.ne.s32.totalorder %s168, %s184
      %p186 = scmp.eq.s32.totalorder %s34, 0
      %p187 = por %p185, %p186
      %s188 = ssub.s32 %s35, %s47
      %s189 = ssub.s32 %s36, %s43
      %s190 = sor.u32 %s188, %s189
      %p191 = scmp.eq.s32.totalorder %s190, 0
      %s193 = sadd.s32 %s192, 1
      %s194 = scalar_select %p191, %s192, %s193
      %p197 = pneg %p191
      %p198 = scmp.eq.s32.totalorder %s28, 1
      %p199 = por %p197, %p198
      %p200 = scmp.ne.s32.totalorder %s192, %s195
      %p201 = scmp.eq.s32.totalorder %s28, 0
      %p202 = por %p200, %p201
      %p203 = scmp.ne.s32.totalorder %s192, %s195
      %p204 = scmp.eq.s32.totalorder %s33, 1
      %p205 = por %p203, %p204
      %p206 = scmp.ne.s32.totalorder %s195, %s196
      %p207 = scmp.eq.s32.totalorder %s33, 0
      %p208 = por %p206, %p207
      %p209 = scmp.ne.s32.totalorder %s195, %s196
      %p210 = scmp.eq.s32.totalorder %s34, 1
      %p211 = por %p209, %p210
      %p213 = scmp.ne.s32.totalorder %s196, %s212
      %p214 = scmp.eq.s32.totalorder %s34, 0
      %p215 = por %p213, %p214
      %s216 = ssub.s32 %s35, %s47
      %s217 = ssub.s32 %s36, %s43
      %s218 = sor.u32 %s216, %s217
      %p219 = scmp.eq.s32.totalorder %s218, 0
      %s221 = sadd.s32 %s220, 1
      %s222 = scalar_select %p219, %s220, %s221
      %p225 = pneg %p219
      %p226 = scmp.eq.s32.totalorder %s28, 1
      %p227 = por %p225, %p226
      %p228 = scmp.ne.s32.totalorder %s220, %s223
      %p229 = scmp.eq.s32.totalorder %s28, 0
      %p230 = por %p228, %p229
      %p231 = scmp.ne.s32.totalorder %s220, %s223
      %p232 = scmp.eq.s32.totalorder %s33, 1
      %p233 = por %p231, %p232
      %p234 = scmp.ne.s32.totalorder %s223, %s224
      %p235 = scmp.eq.s32.totalorder %s33, 0
      %p236 = por %p234, %p235
      %p237 = scmp.ne.s32.totalorder %s223, %s224
      %p238 = scmp.eq.s32.totalorder %s34, 1
      %p239 = por %p237, %p238
      %p241 = scmp.ne.s32.totalorder %s224, %s240
      %p242 = scmp.eq.s32.totalorder %s34, 0
      %p243 = por %p241, %p242
      %p244 = scmp.le.s32.totalorder 1, %s28
      %p245 = scmp.lt.s32.totalorder %s28, 3
      %p246 = pnand %p244, %p245
      %p247 = pneg %p246
      // Predicated region
      $region9: #{tpu_custom_call.1} parent=5 // pred_check
        _
      $region10: #{tpu_custom_call.1} parent=5 // pred_check_branch
        %249 = sbr.rel (%p246) target = $region12
      $region11: #{tpu_custom_call.1} parent=5 // pred_region
        %s250 = ssub.s32 %s28, 1
      $region12: #{tpu_custom_call.1} parent=5 // pred_fallthru
        _
      %p251 = scmp.lt.s32.totalorder %s28, 2
      // Predicated region
      $region13: #{tpu_custom_call.1} parent=5 // pred_check
        %p252 = pneg %p251
      $region14: #{tpu_custom_call.1} parent=5 // pred_check_branch
        %254 = sbr.rel (%p252) target = $region16
      $region15: #{tpu_custom_call.1} parent=5 // pred_region
        // Predicated region
        $region17: #{tpu_custom_call.1} parent=15 // pred_check
          %p255 = pneg %p62
        $region18: #{tpu_custom_call.1} parent=15 // pred_check_branch
          %257 = sbr.rel (%p255) target = $region20
        $region19: #{tpu_custom_call.1} parent=15 // pred_region
          %s258 = sand.u32 %s52, 1
          %s259 = scalar_lea.sflag [#allocation3], %s258
          %s260 = sand.u32 %s52, 1
          %s261 = smul.addr %s260, 8
          %s262 = scalar_lea.vmem [#allocation2], %s261
          %264 = vsyncadd %s259, 0
          %s265 = sadd.s32 %s36, %s35
          %s266 = smul.addr %s265, 8
          %s267 = scalar_lea.hbm %s0, %s266
          %s269 = sshll.u32 %s267, 4
          %s270 = int_to_ptr.hbm [resolvable:$true] %s269
          %s271 = sshll.u32 %s262, 4
          %s272 = int_to_ptr.vmem [resolvable:$true] %s271
          %274 = dma.hbm_to_vmem [thread:$0]  %s270, 128, %s272, %s259
        $region20: #{tpu_custom_call.1} parent=15 // pred_fallthru
          _
        // Predicated region
        $region21: #{tpu_custom_call.1} parent=15 // pred_check
          %p275 = pneg %p90
        $region22: #{tpu_custom_call.1} parent=15 // pred_check_branch
          %277 = sbr.rel (%p275) target = $region24
        $region23: #{tpu_custom_call.1} parent=15 // pred_region
          %s278 = sand.u32 %s28, 1
          %s279 = scalar_lea.sflag [#allocation6], %s278
          %s280 = sand.u32 %s80, 1
          %s281 = smul.addr %s280, 8
          %s282 = scalar_lea.vmem [#allocation5], %s281
          %284 = vsyncadd %s279, 0
          %s285 = sadd.s32 %s36, %s35
          %s286 = smul.addr %s285, 8
          %s287 = scalar_lea.hbm %s1, %s286
          %s289 = sshll.u32 %s287, 4
          %s290 = int_to_ptr.hbm [resolvable:$true] %s289
          %s291 = sshll.u32 %s282, 4
          %s292 = int_to_ptr.vmem [resolvable:$true] %s291
          %294 = dma.hbm_to_vmem [thread:$0]  %s290, 128, %s292, %s279
        $region24: #{tpu_custom_call.1} parent=15 // pred_fallthru
          _
        // Predicated region
        $region25: #{tpu_custom_call.1} parent=15 // pred_check
          %p295 = pneg %p118
        $region26: #{tpu_custom_call.1} parent=15 // pred_check_branch
          %297 = sbr.rel (%p295) target = $region28
        $region27: #{tpu_custom_call.1} parent=15 // pred_region
          %s298 = sand.u32 %s28, 1
          %s299 = scalar_lea.sflag [#allocation6], %s298
          %s300 = sand.u32 %s108, 1
          %s301 = smul.addr %s300, 8
          %s302 = scalar_lea.vmem [#allocation7], %s301
          %304 = vsyncadd %s299, 0
          %s305 = sadd.s32 %s36, %s35
          %s306 = smul.addr %s305, 8
          %s307 = scalar_lea.hbm %s2, %s306
          %s309 = sshll.u32 %s307, 4
          %s310 = int_to_ptr.hbm [resolvable:$true] %s309
          %s311 = sshll.u32 %s302, 4
          %s312 = int_to_ptr.vmem [resolvable:$true] %s311
          %314 = dma.hbm_to_vmem [thread:$0]  %s310, 128, %s312, %s299
        $region28: #{tpu_custom_call.1} parent=15 // pred_fallthru
          _
        // Predicated region
        $region29: #{tpu_custom_call.1} parent=15 // pred_check
          %p315 = pneg %p146
        $region30: #{tpu_custom_call.1} parent=15 // pred_check_branch
          %317 = sbr.rel (%p315) target = $region32
        $region31: #{tpu_custom_call.1} parent=15 // pred_region
          %s318 = sand.u32 %s28, 1
          %s319 = scalar_lea.sflag [#allocation9], %s318
          %s320 = sand.u32 %s136, 1
          %s321 = smul.addr %s320, 24
          %s322 = scalar_lea.vmem [#allocation8], %s321
          %324 = vsyncadd %s319, 0
          %s325 = smul.addr %s35, 3
          %s326 = sadd.s32 %s36, %s325
          %s327 = smul.addr %s326, 8
          %s328 = scalar_lea.hbm %s3, %s327
          %s329 = sshll.u32 %s328, 4
          %s330 = int_to_ptr.hbm [resolvable:$true] %s329
          %s331 = sshll.u32 %s322, 4
          %s332 = int_to_ptr.vmem [resolvable:$true] %s331
          %337 = dma.hbm_to_vmem [thread:$0]  %s330, 384, %s332, %s319, 128, 128, 8
        $region32: #{tpu_custom_call.1} parent=15 // pred_fallthru
          _
        // Predicated region
        $region33: #{tpu_custom_call.1} parent=15 // pred_check
          %p338 = pneg %p174
        $region34: #{tpu_custom_call.1} parent=15 // pred_check_branch
          %340 = sbr.rel (%p338) target = $region36
        $region35: #{tpu_custom_call.1} parent=15 // pred_region
          %s341 = sand.u32 %s28, 1
          %s342 = scalar_lea.sflag [#allocation9], %s341
          %s343 = sand.u32 %s164, 1
          %s344 = smul.addr %s343, 16
          %s345 = scalar_lea.vmem [#allocation10], %s344
          %347 = vsyncadd %s342, 0
          %s348 = smul.addr %s35, 2
          %s349 = sadd.s32 %s36, %s348
          %s350 = smul.addr %s349, 8
          %s351 = scalar_lea.hbm %s4, %s350
          %s352 = sshll.u32 %s351, 4
          %s353 = int_to_ptr.hbm [resolvable:$true] %s352
          %s354 = sshll.u32 %s345, 4
          %s355 = int_to_ptr.vmem [resolvable:$true] %s354
          %360 = dma.hbm_to_vmem [thread:$0]  %s353, 256, %s355, %s342, 128, 128, 8
        $region36: #{tpu_custom_call.1} parent=15 // pred_fallthru
          _
      $region16: #{tpu_custom_call.1} parent=5 // pred_fallthru
        _
      %p361 = scmp.le.s32.totalorder 1, %s28
      %p362 = scmp.lt.s32.totalorder %s28, 3
      %p363 = pnand %p361, %p362
      %p364 = pneg %p363
      // Predicated region
      $region37: #{tpu_custom_call.1} parent=5 // pred_check
        _
      $region38: #{tpu_custom_call.1} parent=5 // pred_check_branch
        %366 = sbr.rel (%p363) target = $region40
      $region39: #{tpu_custom_call.1} parent=5 // pred_region
        %s367 = ssub.s32 %s28, 1
        %s368 = sand.u32 %s55, 1
        %s369 = scalar_lea.sflag [#allocation3], %s368
        %s370 = sand.u32 %s55, 1
        %s371 = smul.addr %s370, 8
        %s372 = scalar_lea.vmem [#allocation2], %s371
        // Predicated region
        $region41: #{tpu_custom_call.1} parent=39 // pred_check
          %p373 = pneg %p68
        $region42: #{tpu_custom_call.1} parent=39 // pred_check_branch
          %375 = sbr.rel (%p373) target = $region44
        $region43: #{tpu_custom_call.1} parent=39 // pred_region
          %377 = dma.done %s369, 128
        $region44: #{tpu_custom_call.1} parent=39 // pred_fallthru
          _
        %s378 = sand.u32 %s33, 1
        %s379 = scalar_lea.sflag [#allocation6], %s378
        %s380 = sand.u32 %s83, 1
        %s381 = smul.addr %s380, 8
        %s382 = scalar_lea.vmem [#allocation5], %s381
        // Predicated region
        $region45: #{tpu_custom_call.1} parent=39 // pred_check
          %p383 = pneg %p96
        $region46: #{tpu_custom_call.1} parent=39 // pred_check_branch
          %385 = sbr.rel (%p383) target = $region48
        $region47: #{tpu_custom_call.1} parent=39 // pred_region
          %387 = dma.done %s379, 128
        $region48: #{tpu_custom_call.1} parent=39 // pred_fallthru
          _
        %s388 = sand.u32 %s33, 1
        %s389 = scalar_lea.sflag [#allocation6], %s388
        %s390 = sand.u32 %s111, 1
        %s391 = smul.addr %s390, 8
        %s392 = scalar_lea.vmem [#allocation7], %s391
        // Predicated region
        $region49: #{tpu_custom_call.1} parent=39 // pred_check
          %p393 = pneg %p124
        $region50: #{tpu_custom_call.1} parent=39 // pred_check_branch
          %395 = sbr.rel (%p393) target = $region52
        $region51: #{tpu_custom_call.1} parent=39 // pred_region
          %397 = dma.done %s389, 128
        $region52: #{tpu_custom_call.1} parent=39 // pred_fallthru
          _
        %s398 = sand.u32 %s33, 1
        %s399 = scalar_lea.sflag [#allocation9], %s398
        %s400 = sand.u32 %s139, 1
        %s401 = smul.addr %s400, 24
        %s402 = scalar_lea.vmem [#allocation8], %s401
        // Predicated region
        $region53: #{tpu_custom_call.1} parent=39 // pred_check
          %p403 = pneg %p152
        $region54: #{tpu_custom_call.1} parent=39 // pred_check_branch
          %405 = sbr.rel (%p403) target = $region56
        $region55: #{tpu_custom_call.1} parent=39 // pred_region
          %407 = dma.done %s399, 384
        $region56: #{tpu_custom_call.1} parent=39 // pred_fallthru
          _
        %s408 = sand.u32 %s33, 1
        %s409 = scalar_lea.sflag [#allocation9], %s408
        %s410 = sand.u32 %s167, 1
        %s411 = smul.addr %s410, 16
        %s412 = scalar_lea.vmem [#allocation10], %s411
        // Predicated region
        $region57: #{tpu_custom_call.1} parent=39 // pred_check
          %p413 = pneg %p180
        $region58: #{tpu_custom_call.1} parent=39 // pred_check_branch
          %415 = sbr.rel (%p413) target = $region60
        $region59: #{tpu_custom_call.1} parent=39 // pred_region
          %417 = dma.done %s409, 256
        $region60: #{tpu_custom_call.1} parent=39 // pred_fallthru
          _
        %s418 = sand.u32 %s55, 1
        %s419 = scalar_lea.sflag [#allocation3], %s418
        %s420 = sand.u32 %s55, 1
        %s421 = smul.addr %s420, 8
        %s422 = scalar_lea.vmem [#allocation2], %s421
        %p423 = pneg %p68
        %p424 = pneg %p65
        %s425 = sand.u32 %s33, 1
        %s426 = scalar_lea.sflag [#allocation6], %s425
        %s427 = sand.u32 %s83, 1
        %s428 = smul.addr %s427, 8
        %s429 = scalar_lea.vmem [#allocation5], %s428
        %p430 = pneg %p96
        %p431 = pneg %p93
        %s432 = sand.u32 %s33, 1
        %s433 = scalar_lea.sflag [#allocation6], %s432
        %s434 = sand.u32 %s111, 1
        %s435 = smul.addr %s434, 8
        %s436 = scalar_lea.vmem [#allocation7], %s435
        %p437 = pneg %p124
        %p438 = pneg %p121
        %s439 = sand.u32 %s33, 1
        %s440 = scalar_lea.sflag [#allocation9], %s439
        %s441 = sand.u32 %s139, 1
        %s442 = smul.addr %s441, 24
        %s443 = scalar_lea.vmem [#allocation8], %s442
        %p444 = pneg %p152
        %p445 = pneg %p149
        %s446 = sand.u32 %s33, 1
        %s447 = scalar_lea.sflag [#allocation9], %s446
        %s448 = sand.u32 %s167, 1
        %s449 = smul.addr %s448, 16
        %s450 = scalar_lea.vmem [#allocation10], %s449
        %p451 = pneg %p180
        %p452 = pneg %p177
        %p453 = pneg %p208
        %p454 = pneg %p205
        %s455 = sand.u32 %s195, 1
        %s456 = scalar_lea.sflag [#allocation4], %s455
        %s457 = sand.u32 %s195, 1
        %s458 = smul.addr %s457, 8
        %s459 = scalar_lea.vmem [#allocation11], %s458
        %p460 = pneg %p236
        %p461 = pneg %p233
        %s462 = sand.u32 %s223, 1
        %s463 = scalar_lea.sflag [#allocation13], %s462
        %s464 = sand.u32 %s223, 1
        %s465 = smul.addr %s464, 40
        %s466 = scalar_lea.vmem [#allocation12], %s465
        %v467 = vld [vmem:[%s372] sm:$0xff]
        %v468 = vld [vmem:[%s382] sm:$0xff]
        %v469 = vld [vmem:[%s392] sm:$0xff]
        %vm470 = vcmp.eq.f32.partialorder %v469, %v468
        %v471 = vmul.f32 %v468, 1.442695
        %v472 = vpow.pop %v471
        %v473 = vmul.f32 %v469, 1.442695
        %v474 = vpow.pop %v473
        %v475 = vsub.f32 %v474, %v472
        %v476 = vsub.f32 %v469, %v468
        %v477 = vadd.f32 %v476, 1e-06
        %v478 = vrcp.pop %v477
        %v479 = vmul.f32 %v477, %v478
        %v480 = vsub.f32 1.0, %v479
        %v481 = vmul.f32 %v478, %v480
        %v482 = vadd.f32 %v478, %v481
        %vm483 = vweird.f32 %v477
        %vm484 = vweird.f32 %v478
        %vm485 = vmor %vm483, %vm484
        %v486 = vsel %vm485, %v478, %v482
        %v487 = vand.u32 2147483647, %v477
        %vm488 = vcmp.eq.f32.partialorder %v487, 8.507059e+37
        %v489 = vand.u32 %v477, 2147483648
        %v490 = vor.u32 1.1754944e-38, %v489
        %v491 = vsel %vm488, %v490, %v486
        %v492 = vmul.f32 %v475, %v491
        %v493 = vmul.f32 %v472, 2.459603
        %v494 = vmin.f32 %v492, %v493
        %vm495 = vcmp.gt.f32.partialorder %v494, %v492
        %v496 = vmul.f32 %v494, %v468
        %v497 = vsub.f32 %v472, %v496
        %v498 = vmul.f32 %v494, %v469
        %v499 = vsub.f32 %v474, %v498
        %v500 = vsel %vm495, %v497, %v499
        %v501 = vlog2.pop %v494
        %v502 = vmul.f32 %v501, 0.6931472
        %v503 = vsub.f32 1.0, %v502
        %v504 = vmul.f32 %v494, %v503
        %v505 = vadd.f32 %v504, %v500
        %v506 = vmul.f32 %v505, 0.5
        %v507 = vsub.f32 %v500, %v504
        %v508 = vmul.f32 %v507, 0.5
        %v509 = vsel %vm470, 0.0, %v494
        %v510 = vsel %vm470, %v474, %v506
        %v511 = vsel %vm470, 0.0, %v508
        %v512 = vmul.f32 %v467, %v509
        %v513 = vadd.f32 %v512, %v510
        %514 = vst [vmem:[%s459] sm:$0xff] %v513
        %v515 = vld [vmem:[%s402] sm:$0xff]
        %v516 = vld [vmem:[%s402 + $0x8] sm:$0xff]
        %v517 = vld [vmem:[%s402 + $0x10] sm:$0xff]
        %v518 = vmul.f32 %v515, %v509
        %v519 = vmul.f32 %v516, %v509
        %v520 = vmul.f32 %v517, %v509
        %521 = vst [vmem:[%s466] sm:$0xff] %v518
        %522 = vst [vmem:[%s466 + $0x8] sm:$0xff] %v519
        %523 = vst [vmem:[%s466 + $0x10] sm:$0xff] %v520
        %v524 = vld [vmem:[%s412] sm:$0xff]
        %v525 = vld [vmem:[%s412 + $0x8] sm:$0xff]
        %v526 = vmul.f32 %v524, %v511
        %v527 = vmul.f32 %v525, %v511
        %s528 = scalar_lea.vmem %s466, 24 [#allocation12]
        %529 = vst [vmem:[%s528] sm:$0xff] %v526
        %530 = vst [vmem:[%s528 + $0x8] sm:$0xff] %v527
        %s531 = sand.u32 %s195, 1
        %s532 = scalar_lea.sflag [#allocation4], %s531
        %s533 = sand.u32 %s195, 1
        %s534 = smul.addr %s533, 8
        %s535 = scalar_lea.vmem [#allocation11], %s534
        %s536 = sand.u32 %s223, 1
        %s537 = scalar_lea.sflag [#allocation13], %s536
        %s538 = sand.u32 %s223, 1
        %s539 = smul.addr %s538, 40
        %s540 = scalar_lea.vmem [#allocation12], %s539
        // Predicated region
        $region61: #{tpu_custom_call.1} parent=39 // pred_check
          %p541 = pneg %p205
        $region62: #{tpu_custom_call.1} parent=39 // pred_check_branch
          %543 = sbr.rel (%p541) target = $region64
        $region63: #{tpu_custom_call.1} parent=39 // pred_region
          %545 = vsyncadd %s532, 0
          %s546 = sadd.s32 %s38, %s37
          %s547 = smul.addr %s546, 8
          %s548 = scalar_lea.hbm %s5, %s547
          %s550 = sshll.u32 %s535, 4
          %s551 = int_to_ptr.vmem [resolvable:$true] %s550
          %s552 = sshll.u32 %s548, 4
          %s553 = int_to_ptr.hbm [resolvable:$true] %s552
          %555 = dma.vmem_to_hbm [thread:$0]  %s551, 128, %s553, %s532
        $region64: #{tpu_custom_call.1} parent=39 // pred_fallthru
          _
        // Predicated region
        $region65: #{tpu_custom_call.1} parent=39 // pred_check
          %p556 = pneg %p233
        $region66: #{tpu_custom_call.1} parent=39 // pred_check_branch
          %558 = sbr.rel (%p556) target = $region68
        $region67: #{tpu_custom_call.1} parent=39 // pred_region
          %560 = vsyncadd %s537, 0
          %s561 = smul.addr %s37, 5
          %s562 = sadd.s32 %s38, %s561
          %s563 = smul.addr %s562, 8
          %s564 = scalar_lea.hbm %s6, %s563
          %s565 = sshll.u32 %s540, 4
          %s566 = int_to_ptr.vmem [resolvable:$true] %s565
          %s567 = sshll.u32 %s564, 4
          %s568 = int_to_ptr.hbm [resolvable:$true] %s567
          %573 = dma.vmem_to_hbm [thread:$0]  %s566, 640, %s568, %s537, 128, 128, 8
        $region68: #{tpu_custom_call.1} parent=39 // pred_fallthru
          _
      $region40: #{tpu_custom_call.1} parent=5 // pred_fallthru
        _
      %p574 = scmp.le.s32.totalorder 2, %s28
      // Predicated region
      $region69: #{tpu_custom_call.1} parent=5 // pred_check
        %p575 = pneg %p574
      $region70: #{tpu_custom_call.1} parent=5 // pred_check_branch
        %577 = sbr.rel (%p575) target = $region72
      $region71: #{tpu_custom_call.1} parent=5 // pred_region
        %s578 = ssub.s32 %s28, 2
        // Predicated region
        $region73: #{tpu_custom_call.1} parent=71 // pred_check
          %p579 = pneg %p211
        $region74: #{tpu_custom_call.1} parent=71 // pred_check_branch
          %581 = sbr.rel (%p579) target = $region76
        $region75: #{tpu_custom_call.1} parent=71 // pred_region
          %s582 = sand.u32 %s196, 1
          %s583 = scalar_lea.sflag [#allocation4], %s582
          %s584 = sand.u32 %s196, 1
          %s585 = smul.addr %s584, 8
          %s586 = scalar_lea.vmem [#allocation11], %s585
          %588 = dma.done %s583, 128
        $region76: #{tpu_custom_call.1} parent=71 // pred_fallthru
          _
        // Predicated region
        $region77: #{tpu_custom_call.1} parent=71 // pred_check
          %p589 = pneg %p239
        $region78: #{tpu_custom_call.1} parent=71 // pred_check_branch
          %591 = sbr.rel (%p589) target = $region80
        $region79: #{tpu_custom_call.1} parent=71 // pred_region
          %s592 = sand.u32 %s224, 1
          %s593 = scalar_lea.sflag [#allocation13], %s592
          %s594 = sand.u32 %s224, 1
          %s595 = smul.addr %s594, 40
          %s596 = scalar_lea.vmem [#allocation12], %s595
          %598 = dma.done %s593, 640
        $region80: #{tpu_custom_call.1} parent=71 // pred_fallthru
          _
      $region72: #{tpu_custom_call.1} parent=5 // pred_fallthru
        _
    $region6: #{tpu_custom_call.1} parent=1 // loop_footer
      %s32 = sadd.s32 1, %s28
    $region7: #{tpu_custom_call.1} parent=1 // loop_footer_branch
      %27 = sbr.rel target = $region3
    $region8: #{tpu_custom_call.1} parent=1 // loop_exit
      _
    %599 = vsyncpa [#allocation3], 1
    %s600 = scalar_lea.sflag [#allocation3], 1
    %601 = vsyncpa %s600, 1
    %602 = vsyncpa [#allocation6], 1
    %s603 = scalar_lea.sflag [#allocation6], 1
    %604 = vsyncpa %s603, 1
    %605 = vsyncpa [#allocation9], 1
    %s606 = scalar_lea.sflag [#allocation9], 1
    %607 = vsyncpa %s606, 1
    %608 = vsyncpa [#allocation4], 1
    %s609 = scalar_lea.sflag [#allocation4], 1
    %610 = vsyncpa %s609, 1
    %611 = vsyncpa [#allocation13], 1
    %s612 = scalar_lea.sflag [#allocation13], 1
    %613 = vsyncpa %s612, 1

</llo_original>
